<compile_context>
chip_gen: v7x
topology: tpu7x:2x2x1
jax: 0.10.0
libtpu: 0.0.40
codegen_flags: <defaults>
</compile_context>

<pallas_src>
import jax
import jax.numpy as jnp
from jax.experimental import pallas as pl
from jax.experimental.pallas import tpu as pltpu

SUBLANE = 8
H_PAD = 128            # hidden dim padded to one full lane width (tiny, resident weights)
SMALL_BATCH_MAX = 512  # up to this many rows: single gridless pallas_call (whole arrays in VMEM)
BATCH_TILE = 2048      # max rows per grid step in the batch-tiled path


def mlp_kernel(x_ref, w1_ref, b1_ref, w2_ref, b2_ref, o_ref):
    # x: (tb, F)      w1: (F, H_PAD)   b1: (1, H_PAD)
    # w2: (H_PAD, O)  b2: (1, O)       o: (tb, O)
    h = jnp.dot(x_ref[...], w1_ref[...], preferred_element_type=jnp.float32)
    h = jnp.maximum(h + b1_ref[...], 0.0)               # bias + ReLU on the VPU
    out = jnp.dot(h, w2_ref[...], preferred_element_type=jnp.float32)
    o_ref[...] = (out + b2_ref[...]).astype(o_ref.dtype)


def prepare_params(w1, b1, w2, b2):
    """One-time prep (outside the hot path).

    PyTorch Linear layout: w1 (H, F), b1 (H,), w2 (O, H), b2 (O,).
    Transpose to (in, out) layout and zero-pad ONLY the hidden dim to 128.
    Input (F) and output (O) dims keep their true sizes, so activations need
    no wrapper pad/slice and HBM traffic stays at the real byte count.
    Zero padding is numerically exact (padded hidden cols: relu(0)=0, times
    zero rows of w2 -> contributes 0).
    """
    H, F = w1.shape
    O = w2.shape[0]
    assert H <= H_PAD
    w1_p = jnp.zeros((F, H_PAD), jnp.float32).at[:, :H].set(w1.T.astype(jnp.float32))
    b1_p = jnp.zeros((1, H_PAD), jnp.float32).at[0, :H].set(b1.astype(jnp.float32))
    w2_p = jnp.zeros((H_PAD, O), jnp.float32).at[:H, :].set(w2.T.astype(jnp.float32))
    b2_p = b2.astype(jnp.float32).reshape(1, O)
    return (w1_p, b1_p, w2_p, b2_p)


def _round_up(n, m):
    return ((n + m - 1) // m) * m


def _choose_tile(B):
    # >=2 grid steps when possible (v7x megacore sharding via "parallel"),
    # capped at BATCH_TILE so per-step DMA dominates fixed grid-step overhead
    # while the working set stays a few MiB (fits v5e/v6e/v7x scoped VMEM).
    half = _round_up(max(1, (B + 1) // 2), SUBLANE)
    return max(SUBLANE, min(BATCH_TILE, half))


def _call_single_block(x, w1_p, b1_p, w2_p, b2_p):
    # Gridless: whole (small) arrays land in VMEM as full-array blocks.
    B = x.shape[0]
    O = w2_p.shape[1]
    return pl.pallas_call(
        mlp_kernel,
        out_shape=jax.ShapeDtypeStruct((B, O), jnp.float32),
    )(x, w1_p, b1_p, w2_p, b2_p)


def _call_batch_tiled(x, w1_p, b1_p, w2_p, b2_p):
    # Scaled-up path: tile over batch; weights resident (constant index_map);
    # batch axis "parallel" so v7x's two TensorCores split the grid.
    B, F = x.shape
    O = w2_p.shape[1]
    tb = _choose_tile(B)
    return pl.pallas_call(
        mlp_kernel,
        out_shape=jax.ShapeDtypeStruct((B, O), jnp.float32),
        grid=(pl.cdiv(B, tb),),  # ragged last tile handled by block masking
        in_specs=[
            pl.BlockSpec((tb, F), lambda i: (i, 0)),
            pl.BlockSpec((F, H_PAD), lambda i: (0, 0)),
            pl.BlockSpec((1, H_PAD), lambda i: (0, 0)),
            pl.BlockSpec((H_PAD, O), lambda i: (0, 0)),
            pl.BlockSpec((1, O), lambda i: (0, 0)),
        ],
        out_specs=pl.BlockSpec((tb, O), lambda i: (i, 0)),
        compiler_params=pltpu.CompilerParams(
            dimension_semantics=("parallel",)),
    )(x, w1_p, b1_p, w2_p, b2_p)


@jax.jit
def net_forward(x, params):
    """Forward pass of Net: predict(relu(hidden(x))). Output shape (B, n_output)."""
    w1_p, b1_p, w2_p, b2_p = params
    B = x.shape[0]  # static under jit
    if B <= SMALL_BATCH_MAX:
        return _call_single_block(x, w1_p, b1_p, w2_p, b2_p)
    return _call_batch_tiled(x, w1_p, b1_p, w2_p, b2_p)


if __name__ == "__main__":
    # Shapes from classification.py: Net(n_feature=2, n_hidden=10, n_output=2).
    n_feature, n_hidden, n_output = 2, 10, 2

    key = jax.random.PRNGKey(0)
    k0, k1, kw1, kb1, kw2, kb2 = jax.random.split(key, 6)

    # Deterministic init (uniform, like torch Linear default 1/sqrt(fan_in)).
    lim1 = 1.0 / (n_feature ** 0.5)
    lim2 = 1.0 / (n_hidden ** 0.5)
    w1 = jax.random.uniform(kw1, (n_hidden, n_feature), jnp.float32, -lim1, lim1)
    b1 = jax.random.uniform(kb1, (n_hidden,), jnp.float32, -lim1, lim1)
    w2 = jax.random.uniform(kw2, (n_output, n_hidden), jnp.float32, -lim2, lim2)
    b2 = jax.random.uniform(kb2, (n_output,), jnp.float32, -lim2, lim2)

    params = prepare_params(w1, b1, w2, b2)

    def ref_fn(x):
        return jnp.maximum(x @ w1.T + b1, 0.0) @ w2.T + b2

    # --- Tiny-batch case (single gridless pallas_call): batch=8, two clusters ---
    batch = 8
    x0 = 2.0 + jax.random.normal(k0, (batch // 2, n_feature), dtype=jnp.float32)
    x1 = -2.0 + jax.random.normal(k1, (batch // 2, n_feature), dtype=jnp.float32)
    x_small = jnp.concatenate([x0, x1], axis=0).astype(jnp.float32)

    out_small = jax.block_until_ready(net_forward(x_small, params))
    assert out_small.shape == (batch, n_output)
    assert jnp.allclose(out_small, ref_fn(x_small), atol=1e-5, rtol=1e-5)

    # --- Tiled path with a ragged last tile (exercises grid + block masking) ---
    big_batch = 1030  # tile = 520 -> grid of 2, last block has 510 valid rows
    x_big = jax.random.normal(k0, (big_batch, n_feature), dtype=jnp.float32)
    out_big = jax.block_until_ready(net_forward(x_big, params))
    assert out_big.shape == (big_batch, n_output)
    assert jnp.allclose(out_big, ref_fn(x_big), atol=1e-5, rtol=1e-5)

    print("KERNEL_OK")
</pallas_src>

<mosaic_0001>
module attributes {stable_mosaic.version = 11 : i64} {
  func.func @mlp_kernel(%arg0: memref<8x2xf32, #tpu.memory_space<vmem>>, %arg1: memref<2x128xf32, #tpu.memory_space<vmem>>, %arg2: memref<1x128xf32, #tpu.memory_space<vmem>>, %arg3: memref<128x2xf32, #tpu.memory_space<vmem>>, %arg4: memref<1x2xf32, #tpu.memory_space<vmem>>, %arg5: memref<8x2xf32, #tpu.memory_space<vmem>>) attributes {dimension_semantics = [], scalar_prefetch = 0 : i64, scratch_operands = 0 : i64, tpu.core_type = #tpu.core_type<tc>} {
    %c0 = arith.constant 0 : index
    %c0_0 = arith.constant 0 : index
    %0 = vector.load %arg0[%c0, %c0_0] : memref<8x2xf32, #tpu.memory_space<vmem>>, vector<8x2xf32>
    %c0_1 = arith.constant 0 : index
    %c0_2 = arith.constant 0 : index
    %1 = vector.load %arg1[%c0_1, %c0_2] : memref<2x128xf32, #tpu.memory_space<vmem>>, vector<2x128xf32>
    %cst = arith.constant dense<0.000000e+00> : vector<8x128xf32>
    %2 = tpu.matmul %0, %1, %cst {dimension_numbers = #tpu.dot_dimension_numbers<[1], [0], [0], [1], [0, 0, 1, 1], [], []>} : vector<8x2xf32>, vector<2x128xf32>, vector<8x128xf32> -> vector<8x128xf32>
    %c0_3 = arith.constant 0 : index
    %c0_4 = arith.constant 0 : index
    %3 = vector.load %arg2[%c0_3, %c0_4] : memref<1x128xf32, #tpu.memory_space<vmem>>, vector<1x128xf32>
    %4 = vector.broadcast %3 : vector<1x128xf32> to vector<8x128xf32>
    %5 = arith.addf %2, %4 : vector<8x128xf32>
    %cst_5 = arith.constant 0.000000e+00 : f32
    %6 = vector.broadcast %cst_5 : f32 to vector<8x128xf32>
    %7 = arith.maximumf %5, %6 : vector<8x128xf32>
    %c0_6 = arith.constant 0 : index
    %c0_7 = arith.constant 0 : index
    %8 = vector.load %arg3[%c0_6, %c0_7] : memref<128x2xf32, #tpu.memory_space<vmem>>, vector<128x2xf32>
    %cst_8 = arith.constant dense<0.000000e+00> : vector<8x2xf32>
    %9 = tpu.matmul %7, %8, %cst_8 {dimension_numbers = #tpu.dot_dimension_numbers<[1], [0], [0], [1], [0, 0, 1, 1], [], []>} : vector<8x128xf32>, vector<128x2xf32>, vector<8x2xf32> -> vector<8x2xf32>
    %c0_9 = arith.constant 0 : index
    %c0_10 = arith.constant 0 : index
    %10 = vector.load %arg4[%c0_9, %c0_10] : memref<1x2xf32, #tpu.memory_space<vmem>>, vector<1x2xf32>
    %11 = vector.broadcast %10 : vector<1x2xf32> to vector<8x2xf32>
    %12 = arith.addf %9, %11 : vector<8x2xf32>
    %c0_11 = arith.constant 0 : index
    %c0_12 = arith.constant 0 : index
    %13 = vector.load %arg5[%c0_11, %c0_12] : memref<8x2xf32, #tpu.memory_space<vmem>>, vector<8x2xf32>
    tpu.vector_store %arg5[%c0_11, %c0_12], %12 {strides = array<i32>} : memref<8x2xf32, #tpu.memory_space<vmem>>, vector<8x2xf32>,
    return
  }
}

</mosaic_0001>

<llo_original>
// kernel: net_forward.1
$region0: #{net_forward.1}
  #allocation0 [shape = 'u32[]', space=smem, size = 0x4, offset = 0x4, fixed_abs, tag = 'smem constant byte address 0x4 - core index']
  #allocation1 [shape = 'u32[144,128]{1,0:T(1,128)}', space=vmem, size = 0x12000, scoped, tag = 'internal scratch']
  %s0 = inlined_call_operand.vmem [shape: f32[8,2], index: 0, kind: input, shape index: {}]
  %s1 = inlined_call_operand.vmem [shape: f32[2,128], index: 1, kind: input, shape index: {}]
  %s2 = inlined_call_operand.vmem [shape: f32[1,128], index: 2, kind: input, shape index: {}]
  %s3 = inlined_call_operand.vmem [shape: f32[128,2], index: 3, kind: input, shape index: {}]
  %s4 = inlined_call_operand.vmem [shape: f32[1,2], index: 4, kind: input, shape index: {}]
  %s5 = inlined_call_operand.vmem [shape: f32[8,2], index: 5, kind: output, shape index: {}]
  %s6 = sld [smem:[#allocation0]]
  $region30: #{net_forward.1} parent=0
    _
  %s8 = ssub.s32 1, %s6
  %s9 = scalar_select 0, %s8, %s6
  // Predicated region
  $region2: #{net_forward.1} parent=0 // pred_check
    _
  $region3: #{net_forward.1} parent=0 // pred_check_branch
    %11 = sbr.rel (0) target = $region5
  $region4: #{net_forward.1} parent=0 // pred_region
    _
  $region5: #{net_forward.1} parent=0 // pred_fallthru
    _
  // Predicated region
  $region6: #{net_forward.1} parent=0 // pred_check
    _
  $region7: #{net_forward.1} parent=0 // pred_check_branch
    %13 = sbr.rel (0) target = $region9
  $region8: #{net_forward.1} parent=0 // pred_region
    _
  $region9: #{net_forward.1} parent=0 // pred_fallthru
    _
  // Predicated region
  $region10: #{net_forward.1} parent=0 // pred_check
    _
  $region11: #{net_forward.1} parent=0 // pred_check_branch
    %15 = sbr.rel (0) target = $region13
  $region12: #{net_forward.1} parent=0 // pred_region
    _
  $region13: #{net_forward.1} parent=0 // pred_fallthru
    _
  // Predicated region
  $region14: #{net_forward.1} parent=0 // pred_check
    _
  $region15: #{net_forward.1} parent=0 // pred_check_branch
    %17 = sbr.rel (0) target = $region17
  $region16: #{net_forward.1} parent=0 // pred_region
    _
  $region17: #{net_forward.1} parent=0 // pred_fallthru
    _
  // Predicated region
  $region18: #{net_forward.1} parent=0 // pred_check
    _
  $region19: #{net_forward.1} parent=0 // pred_check_branch
    %19 = sbr.rel (0) target = $region21
  $region20: #{net_forward.1} parent=0 // pred_region
    _
  $region21: #{net_forward.1} parent=0 // pred_fallthru
    _
  %v20 = vld [vmem:[%s0] sm:$0xff]
  %v21 = vld [vmem:[%s1] sm:$0x3]
  %v22 = vld [vmem:[%s2] sm:$0x1]
  %v24 = vlaneseq
  %v25 = vshrl.u32 %v24, 7
  %v26 = vsub.s32 0, %v25
  %v27 = vrot.slane %v22, %v26
  %vm29 = vcmask 15360
  %v31 = vsel %vm29, %v20, 0
  %vm33 = vcmask 1041408
  %v35 = vsel %vm33, %v21, 0
  %37 = vmatprep.subr.mxu0 0.0
  %38 = vmatpush1.msra.mxu0 %v35
  %39 = vmatprep.subr.mxu0 0.0
  %40 = vmatpush1.msra.mxu0 0.0
  %41 = vmatprep.subr.mxu0 0.0
  %42 = vmatpush1.msra.mxu0 0.0
  %43 = vmatprep.subr.mxu0 0.0
  %44 = vmatpush1.msra.mxu0 0.0
  %45 = vmatprep.subr.mxu0 0.0
  %46 = vmatpush1.msra.mxu0 0.0
  %47 = vmatprep.subr.mxu0 0.0
  %48 = vmatpush1.msra.mxu0 0.0
  %49 = vmatprep.subr.mxu0 0.0
  %50 = vmatpush1.msra.mxu0 0.0
  %51 = vmatprep.subr.mxu0 0.0
  %52 = vmatpush1.msra.mxu0 0.0
  %53 = vmatprep.subr.mxu0 0.0
  %54 = vmatpush1.msra.mxu0 0.0
  %55 = vmatprep.subr.mxu0 0.0
  %56 = vmatpush1.msra.mxu0 0.0
  %57 = vmatprep.subr.mxu0 0.0
  %58 = vmatpush1.msra.mxu0 0.0
  %59 = vmatprep.subr.mxu0 0.0
  %60 = vmatpush1.msra.mxu0 0.0
  %61 = vmatprep.subr.mxu0 0.0
  %62 = vmatpush1.msra.mxu0 0.0
  %63 = vmatprep.subr.mxu0 0.0
  %64 = vmatpush1.msra.mxu0 0.0
  %65 = vmatprep.subr.mxu0 0.0
  %66 = vmatpush1.msra.mxu0 0.0
  %67 = vmatprep.subr.mxu0 0.0
  %68 = vmatpush1.msra.mxu0 0.0
  %69 = vmatprep.subr.mxu0 0.0
  %70 = vmatpush1.msra.mxu0 0.0
  %71 = vmatprep.subr.mxu0 0.0
  %72 = vmatpush1.msra.mxu0 0.0
  %73 = vmatprep.subr.mxu0 0.0
  %74 = vmatpush1.msra.mxu0 0.0
  %75 = vmatprep.subr.mxu0 0.0
  %76 = vmatpush1.msra.mxu0 0.0
  %77 = vmatprep.subr.mxu0 0.0
  %78 = vmatpush1.msra.mxu0 0.0
  %79 = vmatprep.subr.mxu0 0.0
  %80 = vmatpush1.msra.mxu0 0.0
  %81 = vmatprep.subr.mxu0 0.0
  %82 = vmatpush1.msra.mxu0 0.0
  %83 = vmatprep.subr.mxu0 0.0
  %84 = vmatpush1.msra.mxu0 0.0
  %85 = vmatprep.subr.mxu0 0.0
  %86 = vmatpush1.msra.mxu0 0.0
  %87 = vmatprep.subr.mxu0 0.0
  %88 = vmatpush1.msra.mxu0 0.0
  %89 = vmatprep.subr.mxu0 0.0
  %90 = vmatpush1.msra.mxu0 0.0
  %91 = vmatprep.subr.mxu0 0.0
  %92 = vmatpush1.msra.mxu0 0.0
  %93 = vmatprep.subr.mxu0 0.0
  %94 = vmatpush1.msra.mxu0 0.0
  %95 = vmatprep.subr.mxu0 0.0
  %96 = vmatpush1.msra.mxu0 0.0
  %97 = vmatprep.subr.mxu0 0.0
  %98 = vmatpush1.msra.mxu0 0.0
  %99 = vmatprep.subr.mxu0 0.0
  %100 = vmatpush1.msra.mxu0 0.0
  %101 = vmatprep.mubr.f32.mxu0 0.0
  %102 = vmatmul.mubr.f32.gmra.mrb[0].mxu0 %v31
  %v103 = vpop.f32.mrb[0].mxu0
  %v104 = vadd.f32 %v27, %v103
  %v105 = vpop.f32.mrb[0].mxu0
  %106 = vdwg.mxu0
  %v107 = vmax.f32 %v104, 0.0
  %v108 = vld [vmem:[%s3] sm:$0xff]
  %v109 = vld [vmem:[%s3 + $0x8] sm:$0xff]
  %v110 = vld [vmem:[%s3 + $0x10] sm:$0xff]
  %v111 = vld [vmem:[%s3 + $0x18] sm:$0xff]
  %v112 = vld [vmem:[%s3 + $0x20] sm:$0xff]
  %v113 = vld [vmem:[%s3 + $0x28] sm:$0xff]
  %v114 = vld [vmem:[%s3 + $0x30] sm:$0xff]
  %v115 = vld [vmem:[%s3 + $0x38] sm:$0xff]
  %v116 = vld [vmem:[%s3 + $0x40] sm:$0xff]
  %v117 = vld [vmem:[%s3 + $0x48] sm:$0xff]
  %v118 = vld [vmem:[%s3 + $0x50] sm:$0xff]
  %v119 = vld [vmem:[%s3 + $0x58] sm:$0xff]
  %v120 = vld [vmem:[%s3 + $0x60] sm:$0xff]
  %v121 = vld [vmem:[%s3 + $0x68] sm:$0xff]
  %v122 = vld [vmem:[%s3 + $0x70] sm:$0xff]
  %v123 = vld [vmem:[%s3 + $0x78] sm:$0xff]
  %v124 = vld [vmem:[%s4] sm:$0x1]
  %v126 = vlaneseq
  %v127 = vshrl.u32 %v126, 7
  %v128 = vsub.s32 0, %v127
  %v129 = vrot.slane %v124, %v128
  %131 = vmatprep.subr.mxu0 0.0
  %132 = vmatpush1.msra.mxu0 %v108
  %133 = vmatprep.subr.mxu0 0.0
  %134 = vmatpush1.msra.mxu0 %v109
  %135 = vmatprep.subr.mxu0 0.0
  %136 = vmatpush1.msra.mxu0 %v110
  %137 = vmatprep.subr.mxu0 0.0
  %138 = vmatpush1.msra.mxu0 %v111
  %139 = vmatprep.subr.mxu0 0.0
  %140 = vmatpush1.msra.mxu0 %v112
  %141 = vmatprep.subr.mxu0 0.0
  %142 = vmatpush1.msra.mxu0 %v113
  %143 = vmatprep.subr.mxu0 0.0
  %144 = vmatpush1.msra.mxu0 %v114
  %145 = vmatprep.subr.mxu0 0.0
  %146 = vmatpush1.msra.mxu0 %v115
  %147 = vmatprep.subr.mxu0 0.0
  %148 = vmatpush1.msra.mxu0 %v116
  %149 = vmatprep.subr.mxu0 0.0
  %150 = vmatpush1.msra.mxu0 %v117
  %151 = vmatprep.subr.mxu0 0.0
  %152 = vmatpush1.msra.mxu0 %v118
  %153 = vmatprep.subr.mxu0 0.0
  %154 = vmatpush1.msra.mxu0 %v119
  %155 = vmatprep.subr.mxu0 0.0
  %156 = vmatpush1.msra.mxu0 %v120
  %157 = vmatprep.subr.mxu0 0.0
  %158 = vmatpush1.msra.mxu0 %v121
  %159 = vmatprep.subr.mxu0 0.0
  %160 = vmatpush1.msra.mxu0 %v122
  %161 = vmatprep.subr.mxu0 0.0
  %162 = vmatpush1.msra.mxu0 %v123
  %163 = vmatprep.subr.mxu0 0.0
  %164 = vmatpush1.msra.mxu0 0.0
  %165 = vmatprep.subr.mxu0 0.0
  %166 = vmatpush1.msra.mxu0 0.0
  %167 = vmatprep.subr.mxu0 0.0
  %168 = vmatpush1.msra.mxu0 0.0
  %169 = vmatprep.subr.mxu0 0.0
  %170 = vmatpush1.msra.mxu0 0.0
  %171 = vmatprep.subr.mxu0 0.0
  %172 = vmatpush1.msra.mxu0 0.0
  %173 = vmatprep.subr.mxu0 0.0
  %174 = vmatpush1.msra.mxu0 0.0
  %175 = vmatprep.subr.mxu0 0.0
  %176 = vmatpush1.msra.mxu0 0.0
  %177 = vmatprep.subr.mxu0 0.0
  %178 = vmatpush1.msra.mxu0 0.0
  %179 = vmatprep.subr.mxu0 0.0
  %180 = vmatpush1.msra.mxu0 0.0
  %181 = vmatprep.subr.mxu0 0.0
  %182 = vmatpush1.msra.mxu0 0.0
  %183 = vmatprep.subr.mxu0 0.0
  %184 = vmatpush1.msra.mxu0 0.0
  %185 = vmatprep.subr.mxu0 0.0
  %186 = vmatpush1.msra.mxu0 0.0
  %187 = vmatprep.subr.mxu0 0.0
  %188 = vmatpush1.msra.mxu0 0.0
  %189 = vmatprep.subr.mxu0 0.0
  %190 = vmatpush1.msra.mxu0 0.0
  %191 = vmatprep.subr.mxu0 0.0
  %192 = vmatpush1.msra.mxu0 0.0
  %193 = vmatprep.subr.mxu0 0.0
  %194 = vmatpush1.msra.mxu0 0.0
  %195 = vmatprep.mubr.f32.mxu0 0.0
  %196 = vmatmul.mubr.f32.gmra.mrb[0].mxu0 %v107
  %v197 = vpop.f32.mrb[0].mxu0
  %v198 = vadd.f32 %v129, %v197
  %v199 = vpop.f32.mrb[0].mxu0
  %200 = vdwg.mxu0
  %201 = vst.msk [vmem:[%s5] sm:$0xff] %vm29, %v198
  // Predicated region
  $region22: #{net_forward.1} parent=0 // pred_check
    _
  $region23: #{net_forward.1} parent=0 // pred_check_branch
    %203 = sbr.rel (0) target = $region25
  $region24: #{net_forward.1} parent=0 // pred_region
    _
  $region25: #{net_forward.1} parent=0 // pred_fallthru
    _
  // Predicated region
  $region26: #{net_forward.1} parent=0 // pred_check
    _
  $region27: #{net_forward.1} parent=0 // pred_check_branch
    %205 = sbr.rel (0) target = $region29
  $region28: #{net_forward.1} parent=0 // pred_region
    _
  $region29: #{net_forward.1} parent=0 // pred_fallthru
    _

</llo_original>
